<compile_context>
chip_gen: v5e
topology: v5e:2x2
jax: 0.10.0
libtpu: 0.0.40
codegen_flags: <defaults>
</compile_context>

<pallas_src>
import jax
import jax.numpy as jnp
from jax.experimental import pallas as pl
from jax.experimental.pallas import tpu as pltpu


def _round_up(x, m):
    return ((x + m - 1) // m) * m


def _mlp_kernel(x_ref, w1_ref, b1_ref, w2_ref, b2_ref, o_ref):
    x = x_ref[...]                                             # (tile, pack*in_f)
    h = jnp.dot(x, w1_ref[...], preferred_element_type=jnp.float32)
    h = h + b1_ref[...]                                        # (1, pack*hidden) broadcast
    h = jnp.maximum(h, 0.01 * h)                               # LeakyReLU(0.01)
    y = jnp.dot(h, w2_ref[...], preferred_element_type=jnp.float32)
    y = y + b2_ref[...]                                        # (1, pack*emb) broadcast
    o_ref[...] = y.astype(o_ref.dtype)


def _default_pack():
    # 8-row packing (fully lane-dense 128-lane output) on v6e/v7x where the MXU
    # has large headroom in this HBM-bound kernel; 4-row packing on v5e-class
    # and older chips so the f32 FLOP inflation stays safely memory-bound.
    try:
        kind = jax.devices()[0].device_kind.lower()
    except Exception:
        return 8
    for old in ("v2", "v3", "v4", "v5"):
        if old in kind:
            return 4
    return 8


def dynamic_graph_net(inputs, w1, b1, w2, b2, *, pack=None,
                      row_budget_bytes=4 << 20):
    """Fused Linear -> LeakyReLU(0.01) -> Linear.

    inputs: (..., in_features) float32
    w1: (in_features, hidden), b1: (hidden,)
    w2: (hidden, emb_dim),     b2: (emb_dim,)
    returns (..., emb_dim)
    """
    in_f, hid = w1.shape
    emb = w2.shape[1]

    lead_shape = inputs.shape[:-1]
    x2d = inputs.reshape(-1, in_f)                 # free contiguous reshape
    rows = x2d.shape[0]

    if pack is None:
        pack = _default_pack()
    pack = max(1, int(pack))

    # Pad rows to a multiple of `pack` (extra HBM copy only when needed).
    rows_p = _round_up(max(rows, 1), pack)
    if rows_p != rows:
        x2d = jnp.pad(x2d, ((0, rows_p - rows), (0, 0)))
    n_super = rows_p // pack

    # Block-diagonal packed weights / tiled biases (tiny, built per call).
    eye = jnp.eye(pack, dtype=w1.dtype)
    w1_bd = jnp.kron(eye, w1)                      # (pack*in_f, pack*hid)
    w2_bd = jnp.kron(eye.astype(w2.dtype), w2)     # (pack*hid, pack*emb)
    b1_bd = jnp.tile(b1, pack).reshape(1, pack * hid)
    b2_bd = jnp.tile(b2, pack).reshape(1, pack * emb)

    x_p = x2d.reshape(n_super, pack * in_f)        # free contiguous reshape

    # ---- super-row tile: HBM-byte budget per step, >=4 steps when possible ----
    bytes_per_super = pack * (in_f + emb) * 4      # x + out traffic per super-row
    tile_budget = max(8, row_budget_bytes // bytes_per_super)
    tile_grid = -(-n_super // 4)                   # cdiv: keep >= 4 grid steps
    super_tile = max(8, min(tile_budget, tile_grid))
    super_tile = _round_up(super_tile, 8)
    super_tile = min(super_tile, _round_up(n_super, 8))

    grid = (pl.cdiv(n_super, super_tile),)         # partial edge block is OK

    out_p = pl.pallas_call(
        _mlp_kernel,
        out_shape=jax.ShapeDtypeStruct((n_super, pack * emb), inputs.dtype),
        grid_spec=pltpu.PrefetchScalarGridSpec(
            num_scalar_prefetch=0,
            grid=grid,
            in_specs=[
                pl.BlockSpec((super_tile, pack * in_f), lambda i: (i, 0)),
                pl.BlockSpec((pack * in_f, pack * hid), lambda i: (0, 0)),
                pl.BlockSpec((1, pack * hid), lambda i: (0, 0)),
                pl.BlockSpec((pack * hid, pack * emb), lambda i: (0, 0)),
                pl.BlockSpec((1, pack * emb), lambda i: (0, 0)),
            ],
            out_specs=pl.BlockSpec((super_tile, pack * emb), lambda i: (i, 0)),
        ),
        compiler_params=pltpu.CompilerParams(
            dimension_semantics=("parallel",),
            vmem_limit_bytes=32 * 1024 * 1024,
        ),
    )(x_p, w1_bd, b1_bd, w2_bd, b2_bd)

    out = out_p.reshape(rows_p, emb)               # free contiguous reshape
    if rows_p != rows:
        out = out[:rows]
    return out.reshape(*lead_shape, emb)


def _reference(inputs, w1, b1, w2, b2):
    h = inputs @ w1 + b1
    h = jnp.where(h > 0, h, 0.01 * h)
    return h @ w2 + b2


if __name__ == "__main__":
    # Module hyperparameters (small, consistent with the PyTorch __init__).
    eigen_dim_origin = 8
    eigen_dim_time = 8
    hidden_dim = 32
    input_dim = 2
    horizon = 8

    emb_dim = eigen_dim_origin + eigen_dim_time            # 16
    in_features = emb_dim + input_dim * horizon            # 32

    key = jax.random.PRNGKey(0)
    k_x, k_w1, k_b1, k_w2, k_b2, k_x2 = jax.random.split(key, 6)

    # Deterministic synthetic parameters (PyTorch-Linear-like uniform init).
    bound1 = 1.0 / (in_features ** 0.5)
    bound2 = 1.0 / (hidden_dim ** 0.5)
    w1 = jax.random.uniform(k_w1, (in_features, hidden_dim),
                            minval=-bound1, maxval=bound1, dtype=jnp.float32)
    b1 = jax.random.uniform(k_b1, (hidden_dim,),
                            minval=-bound1, maxval=bound1, dtype=jnp.float32)
    w2 = jax.random.uniform(k_w2, (hidden_dim, emb_dim),
                            minval=-bound2, maxval=bound2, dtype=jnp.float32)
    b2 = jax.random.uniform(k_b2, (emb_dim,),
                            minval=-bound2, maxval=bound2, dtype=jnp.float32)

    # Case 1: rows divide the pack factor (batch=2, num_nodes=64 -> 128 rows).
    x = jax.random.normal(k_x, (2, 64, in_features), dtype=jnp.float32)
    out = jax.block_until_ready(dynamic_graph_net(x, w1, b1, w2, b2))
    ref = _reference(x, w1, b1, w2, b2)
    assert out.shape == (2, 64, emb_dim)
    assert jnp.allclose(out, ref, atol=1e-5, rtol=1e-5), "mismatch vs reference (even)"

    # Case 2: rows do NOT divide the pack factor -> exercises the padded tail
    # and the partial edge block on the super-row grid axis.
    x2 = jax.random.normal(k_x2, (3, 50, in_features), dtype=jnp.float32)
    out2 = jax.block_until_ready(dynamic_graph_net(x2, w1, b1, w2, b2))
    ref2 = _reference(x2, w1, b1, w2, b2)
    assert out2.shape == (3, 50, emb_dim)
    assert jnp.allclose(out2, ref2, atol=1e-5, rtol=1e-5), "mismatch vs reference (edge)"

    # Case 3: explicit 4-row packing (the v5e-class configuration).
    out3 = jax.block_until_ready(dynamic_graph_net(x, w1, b1, w2, b2, pack=4))
    assert out3.shape == (2, 64, emb_dim)
    assert jnp.allclose(out3, ref, atol=1e-5, rtol=1e-5), "mismatch vs reference (pack=4)"

    print("KERNEL_OK")
</pallas_src>

<mosaic_0001>
module attributes {stable_mosaic.version = 11 : i64} {
  func.func @_mlp_kernel(%arg0: i32, %arg1: memref<8x256xf32, #tpu.memory_space<vmem>>, %arg2: memref<256x256xf32, #tpu.memory_space<vmem>>, %arg3: memref<1x256xf32, #tpu.memory_space<vmem>>, %arg4: memref<256x128xf32, #tpu.memory_space<vmem>>, %arg5: memref<1x128xf32, #tpu.memory_space<vmem>>, %arg6: memref<8x128xf32, #tpu.memory_space<vmem>>) attributes {dimension_semantics = [#tpu.dimension_semantics<parallel>], iteration_bounds = array<i64: 2>, scalar_prefetch = 0 : i64, scratch_operands = 0 : i64, tpu.core_type = #tpu.core_type<tc>, window_params = [{transform_indices = @transform_0, window_bounds = array<i64: 8, 256>}, {pipeline_mode = #tpu.pipeline_mode<synchronous>, transform_indices = @transform_1, window_bounds = array<i64: 256, 256>}, {pipeline_mode = #tpu.pipeline_mode<synchronous>, transform_indices = @transform_2, window_bounds = array<i64: 1, 256>}, {pipeline_mode = #tpu.pipeline_mode<synchronous>, transform_indices = @transform_3, window_bounds = array<i64: 256, 128>}, {pipeline_mode = #tpu.pipeline_mode<synchronous>, transform_indices = @transform_4, window_bounds = array<i64: 1, 128>}, {transform_indices = @transform_5, window_bounds = array<i64: 8, 128>}]} {
    %c0 = arith.constant 0 : index
    %c0_0 = arith.constant 0 : index
    %0 = vector.load %arg1[%c0, %c0_0] : memref<8x256xf32, #tpu.memory_space<vmem>>, vector<8x256xf32>
    %c0_1 = arith.constant 0 : index
    %c0_2 = arith.constant 0 : index
    %1 = vector.load %arg2[%c0_1, %c0_2] : memref<256x256xf32, #tpu.memory_space<vmem>>, vector<256x256xf32>
    %cst = arith.constant dense<0.000000e+00> : vector<8x256xf32>
    %2 = tpu.matmul %0, %1, %cst {dimension_numbers = #tpu.dot_dimension_numbers<[1], [0], [0], [1], [0, 0, 1, 1], [], []>} : vector<8x256xf32>, vector<256x256xf32>, vector<8x256xf32> -> vector<8x256xf32>
    %c0_3 = arith.constant 0 : index
    %c0_4 = arith.constant 0 : index
    %3 = vector.load %arg3[%c0_3, %c0_4] : memref<1x256xf32, #tpu.memory_space<vmem>>, vector<1x256xf32>
    %4 = vector.broadcast %3 : vector<1x256xf32> to vector<8x256xf32>
    %5 = arith.addf %2, %4 : vector<8x256xf32>
    %cst_5 = arith.constant 0.00999999977 : f32
    %6 = vector.broadcast %cst_5 : f32 to vector<8x256xf32>
    %7 = arith.mulf %6, %5 : vector<8x256xf32>
    %8 = arith.maximumf %5, %7 : vector<8x256xf32>
    %c0_6 = arith.constant 0 : index
    %c0_7 = arith.constant 0 : index
    %9 = vector.load %arg4[%c0_6, %c0_7] : memref<256x128xf32, #tpu.memory_space<vmem>>, vector<256x128xf32>
    %cst_8 = arith.constant dense<0.000000e+00> : vector<8x128xf32>
    %10 = tpu.matmul %8, %9, %cst_8 {dimension_numbers = #tpu.dot_dimension_numbers<[1], [0], [0], [1], [0, 0, 1, 1], [], []>} : vector<8x256xf32>, vector<256x128xf32>, vector<8x128xf32> -> vector<8x128xf32>
    %c0_9 = arith.constant 0 : index
    %c0_10 = arith.constant 0 : index
    %11 = vector.load %arg5[%c0_9, %c0_10] : memref<1x128xf32, #tpu.memory_space<vmem>>, vector<1x128xf32>
    %12 = vector.broadcast %11 : vector<1x128xf32> to vector<8x128xf32>
    %13 = arith.addf %10, %12 : vector<8x128xf32>
    %c0_11 = arith.constant 0 : index
    %c0_12 = arith.constant 0 : index
    %14 = vector.load %arg6[%c0_11, %c0_12] : memref<8x128xf32, #tpu.memory_space<vmem>>, vector<8x128xf32>
    tpu.vector_store %arg6[%c0_11, %c0_12], %13 {strides = array<i32>} : memref<8x128xf32, #tpu.memory_space<vmem>>, vector<8x128xf32>,
    return
  }
  func.func @transform_0(%arg0: i32) -> (i32, i32) {
    %c0_i32 = arith.constant 0 : i32
    %c0_i32_0 = arith.constant 0 : i32
    return %arg0, %c0_i32 : i32, i32
  }
  func.func @transform_1(%arg0: i32) -> (i32, i32) {
    %c0_i32 = arith.constant 0 : i32
    %c0_i32_0 = arith.constant 0 : i32
    %c0_i32_1 = arith.constant 0 : i32
    return %c0_i32, %c0_i32_0 : i32, i32
  }
  func.func @transform_2(%arg0: i32) -> (i32, i32) {
    %c0_i32 = arith.constant 0 : i32
    %c0_i32_0 = arith.constant 0 : i32
    %c0_i32_1 = arith.constant 0 : i32
    return %c0_i32, %c0_i32_0 : i32, i32
  }
  func.func @transform_3(%arg0: i32) -> (i32, i32) {
    %c0_i32 = arith.constant 0 : i32
    %c0_i32_0 = arith.constant 0 : i32
    %c0_i32_1 = arith.constant 0 : i32
    return %c0_i32, %c0_i32_0 : i32, i32
  }
  func.func @transform_4(%arg0: i32) -> (i32, i32) {
    %c0_i32 = arith.constant 0 : i32
    %c0_i32_0 = arith.constant 0 : i32
    %c0_i32_1 = arith.constant 0 : i32
    return %c0_i32, %c0_i32_0 : i32, i32
  }
  func.func @transform_5(%arg0: i32) -> (i32, i32) {
    %c0_i32 = arith.constant 0 : i32
    %c0_i32_0 = arith.constant 0 : i32
    return %arg0, %c0_i32 : i32, i32
  }
}

</mosaic_0001>

<llo_original>
// kernel: tpu_custom_call.1
$region0: #{tpu_custom_call.1}
  #allocation0 [shape = 'u32[]', space=smem, size = 0x4, offset = 0x4, fixed_abs, tag = 'smem constant byte address 0x4 - core index']
  #allocation1 [shape = 'u32[72,128]{1,0:T(1,128)}', space=vmem, size = 0x9000, scoped, tag = 'internal scratch']
  %s0 = inlined_call_operand.hbm [shape: f32[16,256], index: 0, kind: input, shape index: {}]
  %s1 = inlined_call_operand.hbm [shape: f32[256,256], index: 1, kind: input, shape index: {}]
  %s2 = inlined_call_operand.hbm [shape: f32[1,256], index: 2, kind: input, shape index: {}]
  %s3 = inlined_call_operand.hbm [shape: f32[256,128], index: 3, kind: input, shape index: {}]
  %s4 = inlined_call_operand.vmem [shape: f32[1,128], index: 4, kind: input, shape index: {}]
  %s5 = inlined_call_operand.hbm [shape: f32[16,128], index: 5, kind: output, shape index: {}]
  %s6 = sld [smem:[#allocation0]]
  $region69: #{tpu_custom_call.1} parent=0
    _
  %s8 = ssub.s32 1, %s6
  %s9 = scalar_select 0, %s8, %s6
  $region1: #{tpu_custom_call.1} parent=0
    #allocation2 [shape = 'u8[16384]{0}', space=vmem, size = 0x4000, scoped, tag = 'input window, operand 0']
    #allocation3 [shape = 's32[2]{0}', space=sflag, size = 0x8, scoped, tag = 'scoped memory for tpu_custom_call.1']
    #allocation4 [shape = 's32[2]{0}', space=sflag, size = 0x8, scoped, tag = 'scoped memory for tpu_custom_call.1']
    #allocation5 [shape = 'u8[262144]{0}', space=vmem, size = 0x40000, scoped, tag = 'input window, operand 1, single buffered']
    #allocation6 [shape = 's32[1]{0}', space=sflag, size = 0x4, scoped, tag = 'scoped memory for tpu_custom_call.1']
    #allocation7 [shape = 'u8[1024]{0}', space=vmem, size = 0x400, scoped, tag = 'input window, operand 2, single buffered']
    #allocation8 [shape = 'u8[131072]{0}', space=vmem, size = 0x20000, scoped, tag = 'input window, operand 3, single buffered']
    #allocation9 [shape = 's32[1]{0}', space=sflag, size = 0x4, scoped, tag = 'scoped memory for tpu_custom_call.1']
    #allocation10 [shape = 'u8[8192]{0}', space=vmem, size = 0x2000, scoped, tag = 'output window, operand 0']
    %10 = vsyncpa [#allocation3], 0
    %s11 = scalar_lea.sflag [#allocation3], 1
    %12 = vsyncpa %s11, 0
    %13 = vsyncpa [#allocation6], 0
    %14 = vsyncpa [#allocation9], 0
    %15 = vsyncpa [#allocation4], 0
    %s16 = scalar_lea.sflag [#allocation4], 1
    %17 = vsyncpa %s16, 0
    loop: start=0, step=1, limit=4
    $region2: #{tpu_custom_call.1} parent=1 // loop_pre_header
      _
    $region3: #{tpu_custom_call.1} parent=1 // loop_header
      %s19 = sphi 0, %s23
      %p20 = scmp.ge.s32.totalorder %s19, 4
      %s29 = sphi 0, %s31
      %s32 = sphi 0, %s29
      %s33 = sphi 0, %s32
      %s49 = sphi 0, %s33
      %s53 = sphi 0, %s53
      %s55 = sphi 0, %s53
      %s56 = sphi 0, %s55
      %s70 = sphi 0, %s56
      %s74 = sphi 0, %s74
      %s76 = sphi 0, %s74
      %s77 = sphi 0, %s76
      %s91 = sphi 0, %s77
      %s95 = sphi 0, %s95
      %s97 = sphi 0, %s95
      %s98 = sphi 0, %s97
      %s112 = sphi 0, %s98
      %s116 = sphi 0, %s116
      %s118 = sphi 0, %s116
      %s119 = sphi 0, %s118
      %s133 = sphi 0, %s119
      %s139 = sphi 0, %s141
      %s142 = sphi 0, %s139
      %s143 = sphi 0, %s142
      %s159 = sphi 0, %s143
    $region4: #{tpu_custom_call.1} parent=1 // loop_header_branch
      %22 = sbr.rel (%p20) target = $region8
    $region5: #{tpu_custom_call.1} parent=1 // loop_body
      %s24 = ssub.s32 %s19, 1
      %s25 = ssub.s32 %s19, 2
      %s26 = sadd.s32 %s19, 1
      %s27 = ssub.s32 %s19, %s26
      %p28 = scmp.eq.s32.totalorder %s27, 0
      %s30 = sadd.s32 %s29, 1
      %s31 = scalar_select %p28, %s29, %s30
      %p34 = pneg %p28
      %p35 = scmp.eq.s32.totalorder %s19, 1
      %p36 = por %p34, %p35
      %p37 = scmp.ne.s32.totalorder %s29, %s32
      %p38 = scmp.eq.s32.totalorder %s19, 0
      %p39 = por %p37, %p38
      %p40 = scmp.ne.s32.totalorder %s29, %s32
      %p41 = scmp.eq.s32.totalorder %s24, 1
      %p42 = por %p40, %p41
      %p43 = scmp.ne.s32.totalorder %s32, %s33
      %p44 = scmp.eq.s32.totalorder %s24, 0
      %p45 = por %p43, %p44
      %p46 = scmp.ne.s32.totalorder %s32, %s33
      %p47 = scmp.eq.s32.totalorder %s25, 1
      %p48 = por %p46, %p47
      %p50 = scmp.ne.s32.totalorder %s33, %s49
      %p51 = scmp.eq.s32.totalorder %s25, 0
      %p52 = por %p50, %p51
      %s54 = sadd.s32 %s53, 1
      %p57 = scmp.eq.s32.totalorder %s19, 1
      %p58 = scmp.ne.s32.totalorder %s53, %s55
      %p59 = scmp.eq.s32.totalorder %s19, 0
      %p60 = por %p58, %p59
      %p61 = scmp.ne.s32.totalorder %s53, %s55
      %p62 = scmp.eq.s32.totalorder %s24, 1
      %p63 = por %p61, %p62
      %p64 = scmp.ne.s32.totalorder %s55, %s56
      %p65 = scmp.eq.s32.totalorder %s24, 0
      %p66 = por %p64, %p65
      %p67 = scmp.ne.s32.totalorder %s55, %s56
      %p68 = scmp.eq.s32.totalorder %s25, 1
      %p69 = por %p67, %p68
      %p71 = scmp.ne.s32.totalorder %s56, %s70
      %p72 = scmp.eq.s32.totalorder %s25, 0
      %p73 = por %p71, %p72
      %s75 = sadd.s32 %s74, 1
      %p78 = scmp.eq.s32.totalorder %s19, 1
      %p79 = scmp.ne.s32.totalorder %s74, %s76
      %p80 = scmp.eq.s32.totalorder %s19, 0
      %p81 = por %p79, %p80
      %p82 = scmp.ne.s32.totalorder %s74, %s76
      %p83 = scmp.eq.s32.totalorder %s24, 1
      %p84 = por %p82, %p83
      %p85 = scmp.ne.s32.totalorder %s76, %s77
      %p86 = scmp.eq.s32.totalorder %s24, 0
      %p87 = por %p85, %p86
      %p88 = scmp.ne.s32.totalorder %s76, %s77
      %p89 = scmp.eq.s32.totalorder %s25, 1
      %p90 = por %p88, %p89
      %p92 = scmp.ne.s32.totalorder %s77, %s91
      %p93 = scmp.eq.s32.totalorder %s25, 0
      %p94 = por %p92, %p93
      %s96 = sadd.s32 %s95, 1
      %p99 = scmp.eq.s32.totalorder %s19, 1
      %p100 = scmp.ne.s32.totalorder %s95, %s97
      %p101 = scmp.eq.s32.totalorder %s19, 0
      %p102 = por %p100, %p101
      %p103 = scmp.ne.s32.totalorder %s95, %s97
      %p104 = scmp.eq.s32.totalorder %s24, 1
      %p105 = por %p103, %p104
      %p106 = scmp.ne.s32.totalorder %s97, %s98
      %p107 = scmp.eq.s32.totalorder %s24, 0
      %p108 = por %p106, %p107
      %p109 = scmp.ne.s32.totalorder %s97, %s98
      %p110 = scmp.eq.s32.totalorder %s25, 1
      %p111 = por %p109, %p110
      %p113 = scmp.ne.s32.totalorder %s98, %s112
      %p114 = scmp.eq.s32.totalorder %s25, 0
      %p115 = por %p113, %p114
      %s117 = sadd.s32 %s116, 1
      %p120 = scmp.eq.s32.totalorder %s19, 1
      %p121 = scmp.ne.s32.totalorder %s116, %s118
      %p122 = scmp.eq.s32.totalorder %s19, 0
      %p123 = por %p121, %p122
      %p124 = scmp.ne.s32.totalorder %s116, %s118
      %p125 = scmp.eq.s32.totalorder %s24, 1
      %p126 = por %p124, %p125
      %p127 = scmp.ne.s32.totalorder %s118, %s119
      %p128 = scmp.eq.s32.totalorder %s24, 0
      %p129 = por %p127, %p128
      %p130 = scmp.ne.s32.totalorder %s118, %s119
      %p131 = scmp.eq.s32.totalorder %s25, 1
      %p132 = por %p130, %p131
      %p134 = scmp.ne.s32.totalorder %s119, %s133
      %p135 = scmp.eq.s32.totalorder %s25, 0
      %p136 = por %p134, %p135
      %s137 = ssub.s32 %s19, %s26
      %p138 = scmp.eq.s32.totalorder %s137, 0
      %s140 = sadd.s32 %s139, 1
      %s141 = scalar_select %p138, %s139, %s140
      %p144 = pneg %p138
      %p145 = scmp.eq.s32.totalorder %s19, 1
      %p146 = por %p144, %p145
      %p147 = scmp.ne.s32.totalorder %s139, %s142
      %p148 = scmp.eq.s32.totalorder %s19, 0
      %p149 = por %p147, %p148
      %p150 = scmp.ne.s32.totalorder %s139, %s142
      %p151 = scmp.eq.s32.totalorder %s24, 1
      %p152 = por %p150, %p151
      %p153 = scmp.ne.s32.totalorder %s142, %s143
      %p154 = scmp.eq.s32.totalorder %s24, 0
      %p155 = por %p153, %p154
      %p156 = scmp.ne.s32.totalorder %s142, %s143
      %p157 = scmp.eq.s32.totalorder %s25, 1
      %p158 = por %p156, %p157
      %p160 = scmp.ne.s32.totalorder %s143, %s159
      %p161 = scmp.eq.s32.totalorder %s25, 0
      %p162 = por %p160, %p161
      %p163 = scmp.le.s32.totalorder 1, %s19
      %p164 = scmp.lt.s32.totalorder %s19, 3
      %p165 = pnand %p163, %p164
      %p166 = pneg %p165
      // Predicated region
      $region9: #{tpu_custom_call.1} parent=5 // pred_check
        _
      $region10: #{tpu_custom_call.1} parent=5 // pred_check_branch
        %168 = sbr.rel (%p165) target = $region12
      $region11: #{tpu_custom_call.1} parent=5 // pred_region
        %s169 = ssub.s32 %s19, 1
        // Predicated region
        $region13: #{tpu_custom_call.1} parent=11 // pred_check
          %p170 = pneg %p66
        $region14: #{tpu_custom_call.1} parent=11 // pred_check_branch
          %172 = sbr.rel (%p170) target = $region16
        $region15: #{tpu_custom_call.1} parent=11 // pred_region
          %174 = vsyncadd [#allocation6], 0
          %s175 = sshll.u32 %s1, 4
          %s176 = int_to_ptr.hbm [resolvable:$true] %s175
          %s177 = sshll.u32 [#allocation5], 4
          %s178 = int_to_ptr.vmem [resolvable:$true] %s177
          %183 = dma.hbm_to_vmem [thread:$0]  %s176, 8192, %s178, [#allocation6], 256, 256, 16
        $region16: #{tpu_custom_call.1} parent=11 // pred_fallthru
          _
        // Predicated region
        $region17: #{tpu_custom_call.1} parent=11 // pred_check
          %p184 = pneg %p87
        $region18: #{tpu_custom_call.1} parent=11 // pred_check_branch
          %186 = sbr.rel (%p184) target = $region20
        $region19: #{tpu_custom_call.1} parent=11 // pred_region
          %188 = vsyncadd [#allocation6], 0
          %s190 = sshll.u32 %s2, 4
          %s191 = int_to_ptr.hbm [resolvable:$true] %s190
          %s192 = sshll.u32 [#allocation7], 4
          %s193 = int_to_ptr.vmem [resolvable:$true] %s192
          %195 = dma.hbm_to_vmem [thread:$0]  %s191, 32, %s193, [#allocation6]
        $region20: #{tpu_custom_call.1} parent=11 // pred_fallthru
          _
        // Predicated region
        $region21: #{tpu_custom_call.1} parent=11 // pred_check
          %p196 = pneg %p108
        $region22: #{tpu_custom_call.1} parent=11 // pred_check_branch
          %198 = sbr.rel (%p196) target = $region24
        $region23: #{tpu_custom_call.1} parent=11 // pred_region
          %200 = vsyncadd [#allocation9], 0
          %s201 = sshll.u32 %s3, 4
          %s202 = int_to_ptr.hbm [resolvable:$true] %s201
          %s203 = sshll.u32 [#allocation8], 4
          %s204 = int_to_ptr.vmem [resolvable:$true] %s203
          %209 = dma.hbm_to_vmem [thread:$0]  %s202, 4096, %s204, [#allocation9], 128, 128, 8
        $region24: #{tpu_custom_call.1} parent=11 // pred_fallthru
          _
        // Predicated region
        $region25: #{tpu_custom_call.1} parent=11 // pred_check
          %p210 = pneg %p129
        $region26: #{tpu_custom_call.1} parent=11 // pred_check_branch
          %212 = sbr.rel (%p210) target = $region28
        $region27: #{tpu_custom_call.1} parent=11 // pred_region
          _
        $region28: #{tpu_custom_call.1} parent=11 // pred_fallthru
          _
      $region12: #{tpu_custom_call.1} parent=5 // pred_fallthru
        _
      %p213 = scmp.lt.s32.totalorder %s19, 2
      // Predicated region
      $region29: #{tpu_custom_call.1} parent=5 // pred_check
        %p214 = pneg %p213
      $region30: #{tpu_custom_call.1} parent=5 // pred_check_branch
        %216 = sbr.rel (%p214) target = $region32
      $region31: #{tpu_custom_call.1} parent=5 // pred_region
        // Predicated region
        $region33: #{tpu_custom_call.1} parent=31 // pred_check
          %p217 = pneg %p39
        $region34: #{tpu_custom_call.1} parent=31 // pred_check_branch
          %219 = sbr.rel (%p217) target = $region36
        $region35: #{tpu_custom_call.1} parent=31 // pred_region
          %s220 = sand.u32 %s29, 1
          %s221 = scalar_lea.sflag [#allocation3], %s220
          %s222 = sand.u32 %s29, 1
          %s223 = smul.addr %s222, 16
          %s224 = scalar_lea.vmem [#allocation2], %s223
          %226 = vsyncadd %s221, 0
          %s227 = smul.addr %s19, 2
          %s228 = smul.addr %s227, 8
          %s229 = scalar_lea.hbm %s0, %s228
          %s231 = sshll.u32 %s229, 4
          %s232 = int_to_ptr.hbm [resolvable:$true] %s231
          %s233 = sshll.u32 %s224, 4
          %s234 = int_to_ptr.vmem [resolvable:$true] %s233
          %236 = dma.hbm_to_vmem [thread:$0]  %s232, 256, %s234, %s221
        $region36: #{tpu_custom_call.1} parent=31 // pred_fallthru
          _
      $region32: #{tpu_custom_call.1} parent=5 // pred_fallthru
        _
      %p237 = scmp.le.s32.totalorder 1, %s19
      %p238 = scmp.lt.s32.totalorder %s19, 3
      %p239 = pnand %p237, %p238
      %p240 = pneg %p239
      // Predicated region
      $region37: #{tpu_custom_call.1} parent=5 // pred_check
        _
      $region38: #{tpu_custom_call.1} parent=5 // pred_check_branch
        %242 = sbr.rel (%p239) target = $region40
      $region39: #{tpu_custom_call.1} parent=5 // pred_region
        %s243 = ssub.s32 %s19, 1
        %s244 = sand.u32 %s32, 1
        %s245 = scalar_lea.sflag [#allocation3], %s244
        %s246 = sand.u32 %s32, 1
        %s247 = smul.addr %s246, 16
        %s248 = scalar_lea.vmem [#allocation2], %s247
        // Predicated region
        $region41: #{tpu_custom_call.1} parent=39 // pred_check
          %p249 = pneg %p45
        $region42: #{tpu_custom_call.1} parent=39 // pred_check_branch
          %251 = sbr.rel (%p249) target = $region44
        $region43: #{tpu_custom_call.1} parent=39 // pred_region
          %253 = dma.done %s245, 256
        $region44: #{tpu_custom_call.1} parent=39 // pred_fallthru
          _
        // Predicated region
        $region45: #{tpu_custom_call.1} parent=39 // pred_check
          %p254 = pneg %p66
        $region46: #{tpu_custom_call.1} parent=39 // pred_check_branch
          %256 = sbr.rel (%p254) target = $region48
        $region47: #{tpu_custom_call.1} parent=39 // pred_region
          %258 = dma.done [#allocation6], 8192
        $region48: #{tpu_custom_call.1} parent=39 // pred_fallthru
          _
        // Predicated region
        $region49: #{tpu_custom_call.1} parent=39 // pred_check
          %p259 = pneg %p87
        $region50: #{tpu_custom_call.1} parent=39 // pred_check_branch
          %261 = sbr.rel (%p259) target = $region52
        $region51: #{tpu_custom_call.1} parent=39 // pred_region
          %263 = dma.done [#allocation6], 32
        $region52: #{tpu_custom_call.1} parent=39 // pred_fallthru
          _
        // Predicated region
        $region53: #{tpu_custom_call.1} parent=39 // pred_check
          %p264 = pneg %p108
        $region54: #{tpu_custom_call.1} parent=39 // pred_check_branch
          %266 = sbr.rel (%p264) target = $region56
        $region55: #{tpu_custom_call.1} parent=39 // pred_region
          %268 = dma.done [#allocation9], 4096
        $region56: #{tpu_custom_call.1} parent=39 // pred_fallthru
          _
        %s269 = sand.u32 %s32, 1
        %s270 = scalar_lea.sflag [#allocation3], %s269
        %s271 = sand.u32 %s32, 1
        %s272 = smul.addr %s271, 16
        %s273 = scalar_lea.vmem [#allocation2], %s272
        %p274 = pneg %p45
        %p275 = pneg %p42
        %p276 = pneg %p66
        %p277 = pneg %p63
        %p278 = pneg %p87
        %p279 = pneg %p84
        %p280 = pneg %p108
        %p281 = pneg %p105
        %p282 = pneg %p129
        %p283 = pneg %p126
        %p284 = pneg %p155
        %p285 = pneg %p152
        %s286 = sand.u32 %s142, 1
        %s287 = scalar_lea.sflag [#allocation4], %s286
        %s288 = sand.u32 %s142, 1
        %s289 = smul.addr %s288, 8
        %s290 = scalar_lea.vmem [#allocation10], %s289
        %v291 = vld [vmem:[%s248] sm:$0xff]
        %v292 = vld [vmem:[%s248 + $0x8] sm:$0xff]
        %v293 = vld [vmem:[#allocation5] sm:$0xff]
        %v294 = vld [vmem:[#allocation5 + $0x8] sm:$0xff]
        %v295 = vld [vmem:[#allocation5 + $0x10] sm:$0xff]
        %v296 = vld [vmem:[#allocation5 + $0x18] sm:$0xff]
        %v297 = vld [vmem:[#allocation5 + $0x20] sm:$0xff]
        %v298 = vld [vmem:[#allocation5 + $0x28] sm:$0xff]
        %v299 = vld [vmem:[#allocation5 + $0x30] sm:$0xff]
        %v300 = vld [vmem:[#allocation5 + $0x38] sm:$0xff]
        %v301 = vld [vmem:[#allocation5 + $0x40] sm:$0xff]
        %v302 = vld [vmem:[#allocation5 + $0x48] sm:$0xff]
        %v303 = vld [vmem:[#allocation5 + $0x50] sm:$0xff]
        %v304 = vld [vmem:[#allocation5 + $0x58] sm:$0xff]
        %v305 = vld [vmem:[#allocation5 + $0x60] sm:$0xff]
        %v306 = vld [vmem:[#allocation5 + $0x68] sm:$0xff]
        %v307 = vld [vmem:[#allocation5 + $0x70] sm:$0xff]
        %v308 = vld [vmem:[#allocation5 + $0x78] sm:$0xff]
        %v309 = vld [vmem:[#allocation5 + $0x80] sm:$0xff]
        %v310 = vld [vmem:[#allocation5 + $0x88] sm:$0xff]
        %v311 = vld [vmem:[#allocation5 + $0x90] sm:$0xff]
        %v312 = vld [vmem:[#allocation5 + $0x98] sm:$0xff]
        %v313 = vld [vmem:[#allocation5 + $0xa0] sm:$0xff]
        %v314 = vld [vmem:[#allocation5 + $0xa8] sm:$0xff]
        %v315 = vld [vmem:[#allocation5 + $0xb0] sm:$0xff]
        %v316 = vld [vmem:[#allocation5 + $0xb8] sm:$0xff]
        %v317 = vld [vmem:[#allocation5 + $0xc0] sm:$0xff]
        %v318 = vld [vmem:[#allocation5 + $0xc8] sm:$0xff]
        %v319 = vld [vmem:[#allocation5 + $0xd0] sm:$0xff]
        %v320 = vld [vmem:[#allocation5 + $0xd8] sm:$0xff]
        %v321 = vld [vmem:[#allocation5 + $0xe0] sm:$0xff]
        %v322 = vld [vmem:[#allocation5 + $0xe8] sm:$0xff]
        %v323 = vld [vmem:[#allocation5 + $0xf0] sm:$0xff]
        %v324 = vld [vmem:[#allocation5 + $0xf8] sm:$0xff]
        %v325 = vld [vmem:[#allocation5 + $0x100] sm:$0xff]
        %v326 = vld [vmem:[#allocation5 + $0x108] sm:$0xff]
        %v327 = vld [vmem:[#allocation5 + $0x110] sm:$0xff]
        %v328 = vld [vmem:[#allocation5 + $0x118] sm:$0xff]
        %v329 = vld [vmem:[#allocation5 + $0x120] sm:$0xff]
        %v330 = vld [vmem:[#allocation5 + $0x128] sm:$0xff]
        %v331 = vld [vmem:[#allocation5 + $0x130] sm:$0xff]
        %v332 = vld [vmem:[#allocation5 + $0x138] sm:$0xff]
        %v333 = vld [vmem:[#allocation5 + $0x140] sm:$0xff]
        %v334 = vld [vmem:[#allocation5 + $0x148] sm:$0xff]
        %v335 = vld [vmem:[#allocation5 + $0x150] sm:$0xff]
        %v336 = vld [vmem:[#allocation5 + $0x158] sm:$0xff]
        %v337 = vld [vmem:[#allocation5 + $0x160] sm:$0xff]
        %v338 = vld [vmem:[#allocation5 + $0x168] sm:$0xff]
        %v339 = vld [vmem:[#allocation5 + $0x170] sm:$0xff]
        %v340 = vld [vmem:[#allocation5 + $0x178] sm:$0xff]
        %v341 = vld [vmem:[#allocation5 + $0x180] sm:$0xff]
        %v342 = vld [vmem:[#allocation5 + $0x188] sm:$0xff]
        %v343 = vld [vmem:[#allocation5 + $0x190] sm:$0xff]
        %v344 = vld [vmem:[#allocation5 + $0x198] sm:$0xff]
        %v345 = vld [vmem:[#allocation5 + $0x1a0] sm:$0xff]
        %v346 = vld [vmem:[#allocation5 + $0x1a8] sm:$0xff]
        %v347 = vld [vmem:[#allocation5 + $0x1b0] sm:$0xff]
        %v348 = vld [vmem:[#allocation5 + $0x1b8] sm:$0xff]
        %v349 = vld [vmem:[#allocation5 + $0x1c0] sm:$0xff]
        %v350 = vld [vmem:[#allocation5 + $0x1c8] sm:$0xff]
        %v351 = vld [vmem:[#allocation5 + $0x1d0] sm:$0xff]
        %v352 = vld [vmem:[#allocation5 + $0x1d8] sm:$0xff]
        %v353 = vld [vmem:[#allocation5 + $0x1e0] sm:$0xff]
        %v354 = vld [vmem:[#allocation5 + $0x1e8] sm:$0xff]
        %v355 = vld [vmem:[#allocation5 + $0x1f0] sm:$0xff]
        %v356 = vld [vmem:[#allocation5 + $0x1f8] sm:$0xff]
        %v357 = vld [vmem:[#allocation7] sm:$0x3]
        %v359 = vperm.slane %v357, 0
        %v360 = vperm.slane %v357, 1
        %363 = vmatpush.msra.mxu0 %v323
        %364 = vmatpush.msra.mxu0 %v321
        %365 = vmatpush.msra.mxu0 %v319
        %366 = vmatpush.msra.mxu0 %v317
        %367 = vmatpush.msra.mxu0 %v315
        %368 = vmatpush.msra.mxu0 %v313
        %369 = vmatpush.msra.mxu0 %v311
        %370 = vmatpush.msra.mxu0 %v309
        %371 = vmatpush.msra.mxu0 %v307
        %372 = vmatpush.msra.mxu0 %v305
        %373 = vmatpush.msra.mxu0 %v303
        %374 = vmatpush.msra.mxu0 %v301
        %375 = vmatpush.msra.mxu0 %v299
        %376 = vmatpush.msra.mxu0 %v297
        %377 = vmatpush.msra.mxu0 %v295
        %378 = vmatpush.msra.mxu0 %v293
        %379 = vmatmul.f32.gmra.mxu0 %v291
        %v380 = vpop.f32.mrf.mxu0
        %v381 = vadd.f32 %v359, %v380
        %382 = vdwg.mxu0
        %383 = vmatpush.msra.mxu0 %v355
        %384 = vmatpush.msra.mxu0 %v353
        %385 = vmatpush.msra.mxu0 %v351
        %386 = vmatpush.msra.mxu0 %v349
        %387 = vmatpush.msra.mxu0 %v347
        %388 = vmatpush.msra.mxu0 %v345
        %389 = vmatpush.msra.mxu0 %v343
        %390 = vmatpush.msra.mxu0 %v341
        %391 = vmatpush.msra.mxu0 %v339
        %392 = vmatpush.msra.mxu0 %v337
        %393 = vmatpush.msra.mxu0 %v335
        %394 = vmatpush.msra.mxu0 %v333
        %395 = vmatpush.msra.mxu0 %v331
        %396 = vmatpush.msra.mxu0 %v329
        %397 = vmatpush.msra.mxu0 %v327
        %398 = vmatpush.msra.mxu0 %v325
        %399 = vmatmul.f32.gmra.mxu0 %v292
        %v400 = vpop.f32.mrf.mxu0
        %v401 = vadd.f32 %v381, %v400
        %402 = vdwg.mxu0
        %403 = vmatpush.msra.mxu0 %v324
        %404 = vmatpush.msra.mxu0 %v322
        %405 = vmatpush.msra.mxu0 %v320
        %406 = vmatpush.msra.mxu0 %v318
        %407 = vmatpush.msra.mxu0 %v316
        %408 = vmatpush.msra.mxu0 %v314
        %409 = vmatpush.msra.mxu0 %v312
        %410 = vmatpush.msra.mxu0 %v310
        %411 = vmatpush.msra.mxu0 %v308
        %412 = vmatpush.msra.mxu0 %v306
        %413 = vmatpush.msra.mxu0 %v304
        %414 = vmatpush.msra.mxu0 %v302
        %415 = vmatpush.msra.mxu0 %v300
        %416 = vmatpush.msra.mxu0 %v298
        %417 = vmatpush.msra.mxu0 %v296
        %418 = vmatpush.msra.mxu0 %v294
        %419 = vmatmul.f32.gmra.mxu0 %v291
        %v420 = vpop.f32.mrf.mxu0
        %v421 = vadd.f32 %v360, %v420
        %422 = vdwg.mxu0
        %423 = vmatpush.msra.mxu0 %v356
        %424 = vmatpush.msra.mxu0 %v354
        %425 = vmatpush.msra.mxu0 %v352
        %426 = vmatpush.msra.mxu0 %v350
        %427 = vmatpush.msra.mxu0 %v348
        %428 = vmatpush.msra.mxu0 %v346
        %429 = vmatpush.msra.mxu0 %v344
        %430 = vmatpush.msra.mxu0 %v342
        %431 = vmatpush.msra.mxu0 %v340
        %432 = vmatpush.msra.mxu0 %v338
        %433 = vmatpush.msra.mxu0 %v336
        %434 = vmatpush.msra.mxu0 %v334
        %435 = vmatpush.msra.mxu0 %v332
        %436 = vmatpush.msra.mxu0 %v330
        %437 = vmatpush.msra.mxu0 %v328
        %438 = vmatpush.msra.mxu0 %v326
        %439 = vmatmul.f32.gmra.mxu0 %v292
        %v440 = vpop.f32.mrf.mxu0
        %v441 = vadd.f32 %v421, %v440
        %442 = vdwg.mxu0
        %v443 = vmul.f32 %v401, 0.01
        %v444 = vmul.f32 %v441, 0.01
        %v445 = vmax.f32 %v401, %v443
        %v446 = vmax.f32 %v441, %v444
        %v447 = vld [vmem:[#allocation8] sm:$0xff]
        %v448 = vld [vmem:[#allocation8 + $0x8] sm:$0xff]
        %v449 = vld [vmem:[#allocation8 + $0x10] sm:$0xff]
        %v450 = vld [vmem:[#allocation8 + $0x18] sm:$0xff]
        %v451 = vld [vmem:[#allocation8 + $0x20] sm:$0xff]
        %v452 = vld [vmem:[#allocation8 + $0x28] sm:$0xff]
        %v453 = vld [vmem:[#allocation8 + $0x30] sm:$0xff]
        %v454 = vld [vmem:[#allocation8 + $0x38] sm:$0xff]
        %v455 = vld [vmem:[#allocation8 + $0x40] sm:$0xff]
        %v456 = vld [vmem:[#allocation8 + $0x48] sm:$0xff]
        %v457 = vld [vmem:[#allocation8 + $0x50] sm:$0xff]
        %v458 = vld [vmem:[#allocation8 + $0x58] sm:$0xff]
        %v459 = vld [vmem:[#allocation8 + $0x60] sm:$0xff]
        %v460 = vld [vmem:[#allocation8 + $0x68] sm:$0xff]
        %v461 = vld [vmem:[#allocation8 + $0x70] sm:$0xff]
        %v462 = vld [vmem:[#allocation8 + $0x78] sm:$0xff]
        %v463 = vld [vmem:[#allocation8 + $0x80] sm:$0xff]
        %v464 = vld [vmem:[#allocation8 + $0x88] sm:$0xff]
        %v465 = vld [vmem:[#allocation8 + $0x90] sm:$0xff]
        %v466 = vld [vmem:[#allocation8 + $0x98] sm:$0xff]
        %v467 = vld [vmem:[#allocation8 + $0xa0] sm:$0xff]
        %v468 = vld [vmem:[#allocation8 + $0xa8] sm:$0xff]
        %v469 = vld [vmem:[#allocation8 + $0xb0] sm:$0xff]
        %v470 = vld [vmem:[#allocation8 + $0xb8] sm:$0xff]
        %v471 = vld [vmem:[#allocation8 + $0xc0] sm:$0xff]
        %v472 = vld [vmem:[#allocation8 + $0xc8] sm:$0xff]
        %v473 = vld [vmem:[#allocation8 + $0xd0] sm:$0xff]
        %v474 = vld [vmem:[#allocation8 + $0xd8] sm:$0xff]
        %v475 = vld [vmem:[#allocation8 + $0xe0] sm:$0xff]
        %v476 = vld [vmem:[#allocation8 + $0xe8] sm:$0xff]
        %v477 = vld [vmem:[#allocation8 + $0xf0] sm:$0xff]
        %v478 = vld [vmem:[#allocation8 + $0xf8] sm:$0xff]
        %v479 = vld [vmem:[%s4] sm:$0x1]
        %v481 = vperm.slane %v479, 0
        %483 = vmatpush.msra.mxu0 %v462
        %484 = vmatpush.msra.mxu0 %v461
        %485 = vmatpush.msra.mxu0 %v460
        %486 = vmatpush.msra.mxu0 %v459
        %487 = vmatpush.msra.mxu0 %v458
        %488 = vmatpush.msra.mxu0 %v457
        %489 = vmatpush.msra.mxu0 %v456
        %490 = vmatpush.msra.mxu0 %v455
        %491 = vmatpush.msra.mxu0 %v454
        %492 = vmatpush.msra.mxu0 %v453
        %493 = vmatpush.msra.mxu0 %v452
        %494 = vmatpush.msra.mxu0 %v451
        %495 = vmatpush.msra.mxu0 %v450
        %496 = vmatpush.msra.mxu0 %v449
        %497 = vmatpush.msra.mxu0 %v448
        %498 = vmatpush.msra.mxu0 %v447
        %499 = vmatmul.f32.gmra.mxu0 %v445
        %v500 = vpop.f32.mrf.mxu0
        %v501 = vadd.f32 %v481, %v500
        %502 = vdwg.mxu0
        %503 = vmatpush.msra.mxu0 %v478
        %504 = vmatpush.msra.mxu0 %v477
        %505 = vmatpush.msra.mxu0 %v476
        %506 = vmatpush.msra.mxu0 %v475
        %507 = vmatpush.msra.mxu0 %v474
        %508 = vmatpush.msra.mxu0 %v473
        %509 = vmatpush.msra.mxu0 %v472
        %510 = vmatpush.msra.mxu0 %v471
        %511 = vmatpush.msra.mxu0 %v470
        %512 = vmatpush.msra.mxu0 %v469
        %513 = vmatpush.msra.mxu0 %v468
        %514 = vmatpush.msra.mxu0 %v467
        %515 = vmatpush.msra.mxu0 %v466
        %516 = vmatpush.msra.mxu0 %v465
        %517 = vmatpush.msra.mxu0 %v464
        %518 = vmatpush.msra.mxu0 %v463
        %519 = vmatmul.f32.gmra.mxu0 %v446
        %v520 = vpop.f32.mrf.mxu0
        %v521 = vadd.f32 %v501, %v520
        %522 = vdwg.mxu0
        %523 = vst [vmem:[%s290] sm:$0xff] %v521
        %s524 = sand.u32 %s142, 1
        %s525 = scalar_lea.sflag [#allocation4], %s524
        %s526 = sand.u32 %s142, 1
        %s527 = smul.addr %s526, 8
        %s528 = scalar_lea.vmem [#allocation10], %s527
        // Predicated region
        $region57: #{tpu_custom_call.1} parent=39 // pred_check
          %p529 = pneg %p152
        $region58: #{tpu_custom_call.1} parent=39 // pred_check_branch
          %531 = sbr.rel (%p529) target = $region60
        $region59: #{tpu_custom_call.1} parent=39 // pred_region
          %533 = vsyncadd %s525, 0
          %s534 = smul.addr %s24, 8
          %s535 = scalar_lea.hbm %s5, %s534
          %s537 = sshll.u32 %s528, 4
          %s538 = int_to_ptr.vmem [resolvable:$true] %s537
          %s539 = sshll.u32 %s535, 4
          %s540 = int_to_ptr.hbm [resolvable:$true] %s539
          %542 = dma.vmem_to_hbm [thread:$0]  %s538, 128, %s540, %s525
        $region60: #{tpu_custom_call.1} parent=39 // pred_fallthru
          _
      $region40: #{tpu_custom_call.1} parent=5 // pred_fallthru
        _
      %p543 = scmp.le.s32.totalorder 2, %s19
      // Predicated region
      $region61: #{tpu_custom_call.1} parent=5 // pred_check
        %p544 = pneg %p543
      $region62: #{tpu_custom_call.1} parent=5 // pred_check_branch
        %546 = sbr.rel (%p544) target = $region64
      $region63: #{tpu_custom_call.1} parent=5 // pred_region
        %s547 = ssub.s32 %s19, 2
        // Predicated region
        $region65: #{tpu_custom_call.1} parent=63 // pred_check
          %p548 = pneg %p158
        $region66: #{tpu_custom_call.1} parent=63 // pred_check_branch
          %550 = sbr.rel (%p548) target = $region68
        $region67: #{tpu_custom_call.1} parent=63 // pred_region
          %s551 = sand.u32 %s143, 1
          %s552 = scalar_lea.sflag [#allocation4], %s551
          %s553 = sand.u32 %s143, 1
          %s554 = smul.addr %s553, 8
          %s555 = scalar_lea.vmem [#allocation10], %s554
          %557 = dma.done %s552, 128
        $region68: #{tpu_custom_call.1} parent=63 // pred_fallthru
          _
      $region64: #{tpu_custom_call.1} parent=5 // pred_fallthru
        _
    $region6: #{tpu_custom_call.1} parent=1 // loop_footer
      %s23 = sadd.s32 1, %s19
    $region7: #{tpu_custom_call.1} parent=1 // loop_footer_branch
      %18 = sbr.rel target = $region3
    $region8: #{tpu_custom_call.1} parent=1 // loop_exit
      _
    %558 = vsyncpa [#allocation3], 1
    %s559 = scalar_lea.sflag [#allocation3], 1
    %560 = vsyncpa %s559, 1
    %561 = vsyncpa [#allocation6], 1
    %562 = vsyncpa [#allocation9], 1
    %563 = vsyncpa [#allocation4], 1
    %s564 = scalar_lea.sflag [#allocation4], 1
    %565 = vsyncpa %s564, 1

</llo_original>
